<compile_context>
chip_gen: v5e
topology: v5e:2x2
jax: 0.10.0
libtpu: 0.0.40
codegen_flags: <defaults>
</compile_context>

<pallas_src>
import jax
import jax.numpy as jnp
from jax.experimental import pallas as pl
from jax.experimental.pallas import tpu as pltpu


# ---------------------------------------------------------------------------
# Pallas kernel: one AST sample per grid step, everything VMEM-resident.
# ---------------------------------------------------------------------------
def _make_ast_kernel(num_tokens, vocab_size, embedding_size):
    N, V, E = num_tokens, vocab_size, embedding_size

    def kernel(idx_ref, emb_ref, wc_ref, bc_ref, att_ref,
               w1_ref, b1_ref, w2_ref, b2_ref, o_ref):
        emb = emb_ref[...]                         # (V, E) f32 embedding table
        idx = idx_ref[...]                         # (N, 3) int32: [left|mid|right]
        iota_v = jax.lax.broadcasted_iota(jnp.int32, (N, V), 1)

        def embed(col):
            ids = idx[:, col:col + 1]                          # (N, 1)
            onehot = (ids == iota_v).astype(jnp.float32)       # (N, V)
            return jnp.dot(onehot, emb,
                           preferred_element_type=jnp.float32)  # (N, E)

        e_l, e_m, e_r = embed(0), embed(1), embed(2)

        # combine + relu; combine_w consumed as three (E, H) slabs so the
        # (N, 3E) concatenation never has to be materialized.
        x = (jnp.dot(e_l, wc_ref[pl.ds(0 * E, E), :], preferred_element_type=jnp.float32)
             + jnp.dot(e_m, wc_ref[pl.ds(1 * E, E), :], preferred_element_type=jnp.float32)
             + jnp.dot(e_r, wc_ref[pl.ds(2 * E, E), :], preferred_element_type=jnp.float32)
             + bc_ref[...])
        x = jnp.maximum(x, 0.0)                                        # (N, H)

        # attention score on the VPU (broadcast mul + lane reduce) rather than
        # a 1-lane-wide MXU matvec on the serial critical path.
        alpha = jnp.tanh(jnp.sum(x * att_ref[...], axis=-1, keepdims=True))   # (N, 1)

        # weighted token sum as (1, N) @ (N, H) on the MXU (LHS-transposed dot).
        s = jax.lax.dot_general(alpha, x, (((0,), (0,)), ((), ())),
                                preferred_element_type=jnp.float32)    # (1, H)

        h = jnp.maximum(
            jnp.dot(s, w1_ref[...], preferred_element_type=jnp.float32) + b1_ref[...],
            0.0)                                                       # (1, H/2)
        o_ref[...] = jnp.tanh(
            jnp.dot(h, w2_ref[...], preferred_element_type=jnp.float32) + b2_ref[...])

    return kernel


def _ast_forward_pallas(idx, params):
    """idx: (B, N, 3) int32 — per-sample [left, mid, right] token indices."""
    B, N, _ = idx.shape
    emb = params["embedding"]
    V, E = emb.shape
    wc, bc = params["combine_w"], params["combine_b"]        # (3E, H), (1, H)
    H = wc.shape[1]
    att_row = params["attention"].reshape(1, H)              # layout plumbing only
    w1, b1 = params["linear_w"], params["linear_b"]          # (H, H/2), (1, H/2)
    w2, b2 = params["linear2_w"], params["linear2_b"]        # (H/2, O), (1, O)
    O = w2.shape[1]

    def weight_spec(a):
        # Full-array block, constant block index -> stays resident across the grid.
        return pl.BlockSpec(a.shape, lambda b: (0, 0))

    out3 = pl.pallas_call(
        _make_ast_kernel(N, V, E),
        out_shape=jax.ShapeDtypeStruct((B, 1, O), jnp.float32),
        grid=(B,),
        in_specs=[
            pl.BlockSpec((None, N, 3), lambda b: (b, 0, 0)),   # per-sample indices
            weight_spec(emb), weight_spec(wc), weight_spec(bc), weight_spec(att_row),
            weight_spec(w1), weight_spec(b1), weight_spec(w2), weight_spec(b2),
        ],
        out_specs=pl.BlockSpec((None, 1, O), lambda b: (b, 0, 0)),
        compiler_params=pltpu.CompilerParams(
            dimension_semantics=("parallel",)),
    )(idx, emb, wc, bc, att_row, w1, b1, w2, b2)
    return out3.reshape(B, O)


@jax.jit
def ast_model_forward(left, mid, right, params):
    """Single-AST forward matching the PyTorch module: (N,) indices -> (O,)."""
    idx = jnp.stack([left, mid, right], axis=-1).astype(jnp.int32)[None]  # (1, N, 3)
    return _ast_forward_pallas(idx, params)[0]


@jax.jit
def ast_model_forward_batched(left, mid, right, params):
    """Batched forward: (B, N) index arrays -> (B, O); one grid step per sample."""
    idx = jnp.stack([left, mid, right], axis=-1).astype(jnp.int32)        # (B, N, 3)
    return _ast_forward_pallas(idx, params)


# ---------------------------------------------------------------------------
# Deterministic parameter init (mimics the PyTorch module's layer shapes).
# ---------------------------------------------------------------------------
def init_params(key, vocab_size, embedding_size, hidden_size, output_size,
                pad_idx=0):
    ks = jax.random.split(key, 8)

    # nn.Embedding: N(0,1), padding_idx row zeroed.
    emb = jax.random.normal(ks[0], (vocab_size, embedding_size), jnp.float32)
    emb = emb.at[pad_idx].set(0.0)

    def linear_init(kw, kb, fan_in, fan_out):
        bound = 1.0 / jnp.sqrt(fan_in)
        w = jax.random.uniform(kw, (fan_in, fan_out), jnp.float32, -bound, bound)
        b = jax.random.uniform(kb, (1, fan_out), jnp.float32, -bound, bound)
        return w, b

    combine_w, combine_b = linear_init(ks[1], ks[2], 3 * embedding_size, hidden_size)
    attention = jax.random.uniform(ks[3], (hidden_size, 1), jnp.float32)  # torch.rand
    linear_w, linear_b = linear_init(ks[4], ks[5], hidden_size, hidden_size // 2)
    linear2_w, linear2_b = linear_init(ks[6], ks[7], hidden_size // 2, output_size)

    return {
        "embedding": emb,
        "combine_w": combine_w, "combine_b": combine_b,
        "attention": attention,
        "linear_w": linear_w, "linear_b": linear_b,
        "linear2_w": linear2_w, "linear2_b": linear2_b,
    }


# Pure-JAX reference of the same forward (correctness oracle).
def reference_forward(left, mid, right, p):
    e = lambda idx: jnp.take(p["embedding"], idx, axis=0)
    x = jnp.concatenate([e(left), e(mid), e(right)], axis=1)
    x = jnp.maximum(x @ p["combine_w"] + p["combine_b"], 0.0)
    alpha = jnp.tanh(x @ p["attention"])
    x = x * alpha
    x = jnp.sum(x, axis=0)
    x = jnp.maximum(x @ p["linear_w"] + p["linear_b"][0], 0.0)
    x = jnp.tanh(x @ p["linear2_w"] + p["linear2_b"][0])
    return x


if __name__ == "__main__":
    # Small, module-consistent shapes.
    vocab_size = 50
    embedding_size = 8     # -> 3E = 24
    hidden_size = 32       # -> H/2 = 16
    output_size = 8
    seq_len = 8            # N tokens per AST
    batch = 4              # samples per batched pallas_call

    key = jax.random.PRNGKey(0)
    kp, kl, km, kr = jax.random.split(key, 4)

    params = init_params(kp, vocab_size, embedding_size, hidden_size, output_size)

    lefts = jax.random.randint(kl, (batch, seq_len), 0, vocab_size, dtype=jnp.int32)
    mids = jax.random.randint(km, (batch, seq_len), 0, vocab_size, dtype=jnp.int32)
    rights = jax.random.randint(kr, (batch, seq_len), 0, vocab_size, dtype=jnp.int32)

    # Tolerance note: the kernel deliberately computes some steps on different
    # units than XLA does in the reference (MXU matmul vs VPU mul+reduce), and
    # default-precision f32 matmuls on the MXU may use bf16 passes, so small
    # (~1e-3) numerical differences are legitimate; semantic bugs would be >>2e-3.
    TOL = 2e-3

    # Single-sample path (exact PyTorch forward semantics).
    out1 = ast_model_forward(lefts[0], mids[0], rights[0], params)
    out1 = jax.block_until_ready(out1)
    ref1 = reference_forward(lefts[0], mids[0], rights[0], params)
    assert out1.shape == (output_size,), out1.shape
    assert jnp.allclose(out1, ref1, atol=TOL, rtol=TOL), (out1, ref1)

    # Batched path: many ASTs per pallas_call, 'parallel' grid axis over samples.
    outB = ast_model_forward_batched(lefts, mids, rights, params)
    outB = jax.block_until_ready(outB)
    refB = jax.vmap(lambda l, m, r: reference_forward(l, m, r, params))(
        lefts, mids, rights)
    assert outB.shape == (batch, output_size), outB.shape
    assert jnp.allclose(outB, refB, atol=TOL, rtol=TOL), (outB, refB)

    print("KERNEL_OK")
</pallas_src>

<mosaic_0001>
module attributes {stable_mosaic.version = 11 : i64} {
  func.func @kernel(%arg0: i32, %arg1: memref<1x8x3xi32, #tpu.memory_space<vmem>>, %arg2: memref<50x8xf32, #tpu.memory_space<vmem>>, %arg3: memref<24x32xf32, #tpu.memory_space<vmem>>, %arg4: memref<1x32xf32, #tpu.memory_space<vmem>>, %arg5: memref<1x32xf32, #tpu.memory_space<vmem>>, %arg6: memref<32x16xf32, #tpu.memory_space<vmem>>, %arg7: memref<1x16xf32, #tpu.memory_space<vmem>>, %arg8: memref<16x8xf32, #tpu.memory_space<vmem>>, %arg9: memref<1x8xf32, #tpu.memory_space<vmem>>, %arg10: memref<1x1x8xf32, #tpu.memory_space<vmem>>) attributes {dimension_semantics = [#tpu.dimension_semantics<parallel>], iteration_bounds = array<i64: 1>, scalar_prefetch = 0 : i64, scratch_operands = 0 : i64, tpu.core_type = #tpu.core_type<tc>, window_params = [{transform_indices = @transform_0, window_bounds = array<i64: 1, 8, 3>}, {pipeline_mode = #tpu.pipeline_mode<synchronous>, transform_indices = @transform_1, window_bounds = array<i64: 50, 8>}, {pipeline_mode = #tpu.pipeline_mode<synchronous>, transform_indices = @transform_2, window_bounds = array<i64: 24, 32>}, {pipeline_mode = #tpu.pipeline_mode<synchronous>, transform_indices = @transform_3, window_bounds = array<i64: 1, 32>}, {pipeline_mode = #tpu.pipeline_mode<synchronous>, transform_indices = @transform_4, window_bounds = array<i64: 1, 32>}, {pipeline_mode = #tpu.pipeline_mode<synchronous>, transform_indices = @transform_5, window_bounds = array<i64: 32, 16>}, {pipeline_mode = #tpu.pipeline_mode<synchronous>, transform_indices = @transform_6, window_bounds = array<i64: 1, 16>}, {pipeline_mode = #tpu.pipeline_mode<synchronous>, transform_indices = @transform_7, window_bounds = array<i64: 16, 8>}, {pipeline_mode = #tpu.pipeline_mode<synchronous>, transform_indices = @transform_8, window_bounds = array<i64: 1, 8>}, {transform_indices = @transform_9, window_bounds = array<i64: 1, 1, 8>}]} {
    %c0 = arith.constant 0 : index
    %c0_0 = arith.constant 0 : index
    %0 = vector.load %arg2[%c0, %c0_0] : memref<50x8xf32, #tpu.memory_space<vmem>>, vector<50x8xf32>
    %c0_1 = arith.constant 0 : index
    %c0_2 = arith.constant 0 : index
    %c0_3 = arith.constant 0 : index
    %1 = vector.load %arg1[%c0_1, %c0_2, %c0_3] : memref<1x8x3xi32, #tpu.memory_space<vmem>>, vector<1x8x3xi32>
    %2 = vector.shape_cast %1 : vector<1x8x3xi32> to vector<8x3xi32>
    %3 = tpu.iota {dimensions = array<i32: 1>} : vector<8x50xi32>
    %4 = vector.extract_strided_slice %2 {offsets = [0, 0], sizes = [8, 1], strides = [1, 1]} : vector<8x3xi32> to vector<8x1xi32>
    %5 = vector.broadcast %4 : vector<8x1xi32> to vector<8x50xi32>
    %6 = arith.cmpi eq, %5, %3 : vector<8x50xi32>
    %7 = arith.extui %6 : vector<8x50xi1> to vector<8x50xi32>
    %8 = arith.sitofp %7 : vector<8x50xi32> to vector<8x50xf32>
    %cst = arith.constant dense<0.000000e+00> : vector<8x8xf32>
    %9 = tpu.matmul %8, %0, %cst {dimension_numbers = #tpu.dot_dimension_numbers<[1], [0], [0], [1], [0, 0, 1, 1], [], []>} : vector<8x50xf32>, vector<50x8xf32>, vector<8x8xf32> -> vector<8x8xf32>
    %10 = vector.extract_strided_slice %2 {offsets = [0, 1], sizes = [8, 1], strides = [1, 1]} : vector<8x3xi32> to vector<8x1xi32>
    %11 = vector.broadcast %10 : vector<8x1xi32> to vector<8x50xi32>
    %12 = arith.cmpi eq, %11, %3 : vector<8x50xi32>
    %13 = arith.extui %12 : vector<8x50xi1> to vector<8x50xi32>
    %14 = arith.sitofp %13 : vector<8x50xi32> to vector<8x50xf32>
    %cst_4 = arith.constant dense<0.000000e+00> : vector<8x8xf32>
    %15 = tpu.matmul %14, %0, %cst_4 {dimension_numbers = #tpu.dot_dimension_numbers<[1], [0], [0], [1], [0, 0, 1, 1], [], []>} : vector<8x50xf32>, vector<50x8xf32>, vector<8x8xf32> -> vector<8x8xf32>
    %16 = vector.extract_strided_slice %2 {offsets = [0, 2], sizes = [8, 1], strides = [1, 1]} : vector<8x3xi32> to vector<8x1xi32>
    %17 = vector.broadcast %16 : vector<8x1xi32> to vector<8x50xi32>
    %18 = arith.cmpi eq, %17, %3 : vector<8x50xi32>
    %19 = arith.extui %18 : vector<8x50xi1> to vector<8x50xi32>
    %20 = arith.sitofp %19 : vector<8x50xi32> to vector<8x50xf32>
    %cst_5 = arith.constant dense<0.000000e+00> : vector<8x8xf32>
    %21 = tpu.matmul %20, %0, %cst_5 {dimension_numbers = #tpu.dot_dimension_numbers<[1], [0], [0], [1], [0, 0, 1, 1], [], []>} : vector<8x50xf32>, vector<50x8xf32>, vector<8x8xf32> -> vector<8x8xf32>
    %c0_6 = arith.constant 0 : index
    %c0_7 = arith.constant 0 : index
    %22 = vector.load %arg3[%c0_6, %c0_7] : memref<24x32xf32, #tpu.memory_space<vmem>>, vector<8x32xf32>
    %cst_8 = arith.constant dense<0.000000e+00> : vector<8x32xf32>
    %23 = tpu.matmul %9, %22, %cst_8 {dimension_numbers = #tpu.dot_dimension_numbers<[1], [0], [0], [1], [0, 0, 1, 1], [], []>} : vector<8x8xf32>, vector<8x32xf32>, vector<8x32xf32> -> vector<8x32xf32>
    %c8 = arith.constant 8 : index
    %c0_9 = arith.constant 0 : index
    %24 = vector.load %arg3[%c8, %c0_9] : memref<24x32xf32, #tpu.memory_space<vmem>>, vector<8x32xf32>
    %cst_10 = arith.constant dense<0.000000e+00> : vector<8x32xf32>
    %25 = tpu.matmul %15, %24, %cst_10 {dimension_numbers = #tpu.dot_dimension_numbers<[1], [0], [0], [1], [0, 0, 1, 1], [], []>} : vector<8x8xf32>, vector<8x32xf32>, vector<8x32xf32> -> vector<8x32xf32>
    %26 = arith.addf %23, %25 : vector<8x32xf32>
    %c16 = arith.constant 16 : index
    %c0_11 = arith.constant 0 : index
    %27 = vector.load %arg3[%c16, %c0_11] : memref<24x32xf32, #tpu.memory_space<vmem>>, vector<8x32xf32>
    %cst_12 = arith.constant dense<0.000000e+00> : vector<8x32xf32>
    %28 = tpu.matmul %21, %27, %cst_12 {dimension_numbers = #tpu.dot_dimension_numbers<[1], [0], [0], [1], [0, 0, 1, 1], [], []>} : vector<8x8xf32>, vector<8x32xf32>, vector<8x32xf32> -> vector<8x32xf32>
    %29 = arith.addf %26, %28 : vector<8x32xf32>
    %c0_13 = arith.constant 0 : index
    %c0_14 = arith.constant 0 : index
    %30 = vector.load %arg4[%c0_13, %c0_14] : memref<1x32xf32, #tpu.memory_space<vmem>>, vector<1x32xf32>
    %31 = vector.broadcast %30 : vector<1x32xf32> to vector<8x32xf32>
    %32 = arith.addf %29, %31 : vector<8x32xf32>
    %cst_15 = arith.constant 0.000000e+00 : f32
    %33 = vector.broadcast %cst_15 : f32 to vector<8x32xf32>
    %34 = arith.maximumf %32, %33 : vector<8x32xf32>
    %c0_16 = arith.constant 0 : index
    %c0_17 = arith.constant 0 : index
    %35 = vector.load %arg5[%c0_16, %c0_17] : memref<1x32xf32, #tpu.memory_space<vmem>>, vector<1x32xf32>
    %36 = vector.broadcast %35 : vector<1x32xf32> to vector<8x32xf32>
    %37 = arith.mulf %34, %36 : vector<8x32xf32>
    %cst_18 = arith.constant dense<0.000000e+00> : vector<8xf32>
    %38 = vector.multi_reduction <add>, %37, %cst_18 [1] : vector<8x32xf32> to vector<8xf32>
    %39 = vector.shape_cast %38 : vector<8xf32> to vector<8x1xf32>
    %40 = math.tanh %39 : vector<8x1xf32>
    %cst_19 = arith.constant dense<0.000000e+00> : vector<1x32xf32>
    %41 = tpu.matmul %40, %34, %cst_19 {dimension_numbers = #tpu.dot_dimension_numbers<[0], [0], [1], [1], [0, 1, 1, 1], [], []>} : vector<8x1xf32>, vector<8x32xf32>, vector<1x32xf32> -> vector<1x32xf32>
    %c0_20 = arith.constant 0 : index
    %c0_21 = arith.constant 0 : index
    %42 = vector.load %arg6[%c0_20, %c0_21] : memref<32x16xf32, #tpu.memory_space<vmem>>, vector<32x16xf32>
    %cst_22 = arith.constant dense<0.000000e+00> : vector<1x16xf32>
    %43 = tpu.matmul %41, %42, %cst_22 {dimension_numbers = #tpu.dot_dimension_numbers<[1], [0], [0], [1], [0, 0, 1, 1], [], []>} : vector<1x32xf32>, vector<32x16xf32>, vector<1x16xf32> -> vector<1x16xf32>
    %c0_23 = arith.constant 0 : index
    %c0_24 = arith.constant 0 : index
    %44 = vector.load %arg7[%c0_23, %c0_24] : memref<1x16xf32, #tpu.memory_space<vmem>>, vector<1x16xf32>
    %45 = arith.addf %43, %44 : vector<1x16xf32>
    %cst_25 = arith.constant 0.000000e+00 : f32
    %46 = vector.broadcast %cst_25 : f32 to vector<1x16xf32>
    %47 = arith.maximumf %45, %46 : vector<1x16xf32>
    %c0_26 = arith.constant 0 : index
    %c0_27 = arith.constant 0 : index
    %48 = vector.load %arg8[%c0_26, %c0_27] : memref<16x8xf32, #tpu.memory_space<vmem>>, vector<16x8xf32>
    %cst_28 = arith.constant dense<0.000000e+00> : vector<1x8xf32>
    %49 = tpu.matmul %47, %48, %cst_28 {dimension_numbers = #tpu.dot_dimension_numbers<[1], [0], [0], [1], [0, 0, 1, 1], [], []>} : vector<1x16xf32>, vector<16x8xf32>, vector<1x8xf32> -> vector<1x8xf32>
    %c0_29 = arith.constant 0 : index
    %c0_30 = arith.constant 0 : index
    %50 = vector.load %arg9[%c0_29, %c0_30] : memref<1x8xf32, #tpu.memory_space<vmem>>, vector<1x8xf32>
    %51 = arith.addf %49, %50 : vector<1x8xf32>
    %52 = math.tanh %51 : vector<1x8xf32>
    %c0_31 = arith.constant 0 : index
    %c0_32 = arith.constant 0 : index
    %c0_33 = arith.constant 0 : index
    %53 = vector.load %arg10[%c0_31, %c0_32, %c0_33] : memref<1x1x8xf32, #tpu.memory_space<vmem>>, vector<1x1x8xf32>
    %54 = vector.shape_cast %53 : vector<1x1x8xf32> to vector<1x8xf32>
    %55 = vector.shape_cast %52 : vector<1x8xf32> to vector<1x1x8xf32>
    tpu.vector_store %arg10[%c0_31, %c0_32, %c0_33], %55 {strides = array<i32>} : memref<1x1x8xf32, #tpu.memory_space<vmem>>, vector<1x1x8xf32>,
    return
  }
  func.func @transform_0(%arg0: i32) -> (i32, i32, i32) {
    %c0_i32 = arith.constant 0 : i32
    %c0_i32_0 = arith.constant 0 : i32
    %c0_i32_1 = arith.constant 0 : i32
    return %arg0, %c0_i32, %c0_i32_0 : i32, i32, i32
  }
  func.func @transform_1(%arg0: i32) -> (i32, i32) {
    %c0_i32 = arith.constant 0 : i32
    %c0_i32_0 = arith.constant 0 : i32
    %c0_i32_1 = arith.constant 0 : i32
    return %c0_i32, %c0_i32_0 : i32, i32
  }
  func.func @transform_2(%arg0: i32) -> (i32, i32) {
    %c0_i32 = arith.constant 0 : i32
    %c0_i32_0 = arith.constant 0 : i32
    %c0_i32_1 = arith.constant 0 : i32
    return %c0_i32, %c0_i32_0 : i32, i32
  }
  func.func @transform_3(%arg0: i32) -> (i32, i32) {
    %c0_i32 = arith.constant 0 : i32
    %c0_i32_0 = arith.constant 0 : i32
    %c0_i32_1 = arith.constant 0 : i32
    return %c0_i32, %c0_i32_0 : i32, i32
  }
  func.func @transform_4(%arg0: i32) -> (i32, i32) {
    %c0_i32 = arith.constant 0 : i32
    %c0_i32_0 = arith.constant 0 : i32
    %c0_i32_1 = arith.constant 0 : i32
    return %c0_i32, %c0_i32_0 : i32, i32
  }
  func.func @transform_5(%arg0: i32) -> (i32, i32) {
    %c0_i32 = arith.constant 0 : i32
    %c0_i32_0 = arith.constant 0 : i32
    %c0_i32_1 = arith.constant 0 : i32
    return %c0_i32, %c0_i32_0 : i32, i32
  }
  func.func @transform_6(%arg0: i32) -> (i32, i32) {
    %c0_i32 = arith.constant 0 : i32
    %c0_i32_0 = arith.constant 0 : i32
    %c0_i32_1 = arith.constant 0 : i32
    return %c0_i32, %c0_i32_0 : i32, i32
  }
  func.func @transform_7(%arg0: i32) -> (i32, i32) {
    %c0_i32 = arith.constant 0 : i32
    %c0_i32_0 = arith.constant 0 : i32
    %c0_i32_1 = arith.constant 0 : i32
    return %c0_i32, %c0_i32_0 : i32, i32
  }
  func.func @transform_8(%arg0: i32) -> (i32, i32) {
    %c0_i32 = arith.constant 0 : i32
    %c0_i32_0 = arith.constant 0 : i32
    %c0_i32_1 = arith.constant 0 : i32
    return %c0_i32, %c0_i32_0 : i32, i32
  }
  func.func @transform_9(%arg0: i32) -> (i32, i32, i32) {
    %c0_i32 = arith.constant 0 : i32
    %c0_i32_0 = arith.constant 0 : i32
    %c0_i32_1 = arith.constant 0 : i32
    return %arg0, %c0_i32, %c0_i32_0 : i32, i32, i32
  }
}

</mosaic_0001>

<llo_original>
// kernel: ast_model_forward.1
$region0: #{ast_model_forward.1}
  #allocation0 [shape = 'u32[]', space=smem, size = 0x4, offset = 0x4, fixed_abs, tag = 'smem constant byte address 0x4 - core index']
  #allocation1 [shape = 'u32[72,128]{1,0:T(1,128)}', space=vmem, size = 0x9000, scoped, tag = 'internal scratch']
  %s0 = inlined_call_operand.vmem [shape: s32[1,8,3], index: 0, kind: input, shape index: {}]
  %s1 = inlined_call_operand.vmem [shape: f32[50,8], index: 1, kind: input, shape index: {}]
  %s2 = inlined_call_operand.vmem [shape: f32[24,32], index: 2, kind: input, shape index: {}]
  %s3 = inlined_call_operand.vmem [shape: f32[1,32], index: 3, kind: input, shape index: {}]
  %s4 = inlined_call_operand.vmem [shape: f32[1,32], index: 4, kind: input, shape index: {}]
  %s5 = inlined_call_operand.vmem [shape: f32[32,16], index: 5, kind: input, shape index: {}]
  %s6 = inlined_call_operand.vmem [shape: f32[1,16], index: 6, kind: input, shape index: {}]
  %s7 = inlined_call_operand.vmem [shape: f32[16,8], index: 7, kind: input, shape index: {}]
  %s8 = inlined_call_operand.vmem [shape: f32[1,8], index: 8, kind: input, shape index: {}]
  %s9 = inlined_call_operand.hbm [shape: f32[1,1,8], index: 9, kind: output, shape index: {}]
  %s10 = sld [smem:[#allocation0]]
  $region46: #{ast_model_forward.1} parent=0
    _
  %s12 = ssub.s32 1, %s10
  %s13 = scalar_select 0, %s12, %s10
  $region1: #{ast_model_forward.1} parent=0
    #allocation2 [shape = 'u8[512]{0}', space=vmem, size = 0x400, scoped, tag = 'output window, operand 0, single buffered']
    #allocation3 [shape = 's32[1]{0}', space=sflag, size = 0x4, scoped, tag = 'scoped memory for ast_model_forward.1']
    %14 = vsyncpa [#allocation3], 0
    // Predicated region
    $region2: #{ast_model_forward.1} parent=1 // pred_check
      _
    $region3: #{ast_model_forward.1} parent=1 // pred_check_branch
      %16 = sbr.rel (0) target = $region5
    $region4: #{ast_model_forward.1} parent=1 // pred_region
      _
    $region5: #{ast_model_forward.1} parent=1 // pred_fallthru
      _
    // Predicated region
    $region6: #{ast_model_forward.1} parent=1 // pred_check
      _
    $region7: #{ast_model_forward.1} parent=1 // pred_check_branch
      %18 = sbr.rel (0) target = $region9
    $region8: #{ast_model_forward.1} parent=1 // pred_region
      _
    $region9: #{ast_model_forward.1} parent=1 // pred_fallthru
      _
    // Predicated region
    $region10: #{ast_model_forward.1} parent=1 // pred_check
      _
    $region11: #{ast_model_forward.1} parent=1 // pred_check_branch
      %20 = sbr.rel (0) target = $region13
    $region12: #{ast_model_forward.1} parent=1 // pred_region
      _
    $region13: #{ast_model_forward.1} parent=1 // pred_fallthru
      _
    // Predicated region
    $region14: #{ast_model_forward.1} parent=1 // pred_check
      _
    $region15: #{ast_model_forward.1} parent=1 // pred_check_branch
      %22 = sbr.rel (0) target = $region17
    $region16: #{ast_model_forward.1} parent=1 // pred_region
      _
    $region17: #{ast_model_forward.1} parent=1 // pred_fallthru
      _
    // Predicated region
    $region18: #{ast_model_forward.1} parent=1 // pred_check
      _
    $region19: #{ast_model_forward.1} parent=1 // pred_check_branch
      %24 = sbr.rel (0) target = $region21
    $region20: #{ast_model_forward.1} parent=1 // pred_region
      _
    $region21: #{ast_model_forward.1} parent=1 // pred_fallthru
      _
    // Predicated region
    $region22: #{ast_model_forward.1} parent=1 // pred_check
      _
    $region23: #{ast_model_forward.1} parent=1 // pred_check_branch
      %26 = sbr.rel (0) target = $region25
    $region24: #{ast_model_forward.1} parent=1 // pred_region
      _
    $region25: #{ast_model_forward.1} parent=1 // pred_fallthru
      _
    // Predicated region
    $region26: #{ast_model_forward.1} parent=1 // pred_check
      _
    $region27: #{ast_model_forward.1} parent=1 // pred_check_branch
      %28 = sbr.rel (0) target = $region29
    $region28: #{ast_model_forward.1} parent=1 // pred_region
      _
    $region29: #{ast_model_forward.1} parent=1 // pred_fallthru
      _
    // Predicated region
    $region30: #{ast_model_forward.1} parent=1 // pred_check
      _
    $region31: #{ast_model_forward.1} parent=1 // pred_check_branch
      %30 = sbr.rel (0) target = $region33
    $region32: #{ast_model_forward.1} parent=1 // pred_region
      _
    $region33: #{ast_model_forward.1} parent=1 // pred_fallthru
      _
    // Predicated region
    $region34: #{ast_model_forward.1} parent=1 // pred_check
      _
    $region35: #{ast_model_forward.1} parent=1 // pred_check_branch
      %32 = sbr.rel (0) target = $region37
    $region36: #{ast_model_forward.1} parent=1 // pred_region
      _
    $region37: #{ast_model_forward.1} parent=1 // pred_fallthru
      _
    %v33 = vld [vmem:[%s1] sm:$0xff]
    %v34 = vld [vmem:[%s1 + $0x8] sm:$0xff]
    %v35 = vld [vmem:[%s1 + $0x10] sm:$0xff]
    %v36 = vld [vmem:[%s1 + $0x18] sm:$0xff]
    %v37 = vld [vmem:[%s1 + $0x20] sm:$0xff]
    %v38 = vld [vmem:[%s1 + $0x28] sm:$0xff]
    %v39 = vld [vmem:[%s1 + $0x30] sm:$0x3]
    %v40 = vld [vmem:[%s0] sm:$0xff]
    %v41 = vlaneseq
    %v42 = vand.u32 %v41, 127
    %43 = vset.pattern.permute.xlu0 0
    %44 = vperm.xlu0 %43, %v40
    %v45 = vpop.permute.xlu0 %44
    %vm46 = vcmp.eq.s32.totalorder %v45, %v42
    %v47 = vsel %vm46, 1, 0
    %v48 = vcvt.s32.f32 %v47
    %vm49 = vcmask 408576
    %v51 = vsel %vm49, %v48, 0
    %vm53 = vcmask 1041408
    %v55 = vsel %vm53, %v39, 0
    %57 = vmatpush.msra.mxu0 0.0
    %58 = vmatpush.msra.mxu0 0.0
    %59 = vmatpush.msra.mxu0 0.0
    %60 = vmatpush.msra.mxu0 0.0
    %61 = vmatpush.msra.mxu0 0.0
    %62 = vmatpush.msra.mxu0 0.0
    %63 = vmatpush.msra.mxu0 0.0
    %64 = vmatpush.msra.mxu0 0.0
    %65 = vmatpush.msra.mxu0 0.0
    %66 = vmatpush.msra.mxu0 %v55
    %67 = vmatpush.msra.mxu0 %v38
    %68 = vmatpush.msra.mxu0 %v37
    %69 = vmatpush.msra.mxu0 %v36
    %70 = vmatpush.msra.mxu0 %v35
    %71 = vmatpush.msra.mxu0 %v34
    %72 = vmatpush.msra.mxu0 %v33
    %73 = vmatmul.f32.gmra.mxu0 %v51
    %v74 = vpop.f32.mrf.mxu0
    %v75 = vadd.f32 0.0, %v74
    %76 = vdwg.mxu0
    %77 = vset.pattern.permute.xlu0 1
    %78 = vperm.xlu0 %77, %v40
    %v79 = vpop.permute.xlu0 %78
    %vm80 = vcmp.eq.s32.totalorder %v79, %v42
    %v81 = vsel %vm80, 1, 0
    %v82 = vcvt.s32.f32 %v81
    %v84 = vsel %vm49, %v82, 0
    %86 = vmatpush.msra.mxu0 0.0
    %87 = vmatpush.msra.mxu0 0.0
    %88 = vmatpush.msra.mxu0 0.0
    %89 = vmatpush.msra.mxu0 0.0
    %90 = vmatpush.msra.mxu0 0.0
    %91 = vmatpush.msra.mxu0 0.0
    %92 = vmatpush.msra.mxu0 0.0
    %93 = vmatpush.msra.mxu0 0.0
    %94 = vmatpush.msra.mxu0 0.0
    %95 = vmatpush.msra.mxu0 %v55
    %96 = vmatpush.msra.mxu0 %v38
    %97 = vmatpush.msra.mxu0 %v37
    %98 = vmatpush.msra.mxu0 %v36
    %99 = vmatpush.msra.mxu0 %v35
    %100 = vmatpush.msra.mxu0 %v34
    %101 = vmatpush.msra.mxu0 %v33
    %102 = vmatmul.f32.gmra.mxu0 %v84
    %v103 = vpop.f32.mrf.mxu0
    %v104 = vadd.f32 0.0, %v103
    %105 = vdwg.mxu0
    %106 = vset.pattern.permute.xlu0 2
    %107 = vperm.xlu0 %106, %v40
    %v108 = vpop.permute.xlu0 %107
    %vm109 = vcmp.eq.s32.totalorder %v108, %v42
    %v110 = vsel %vm109, 1, 0
    %v111 = vcvt.s32.f32 %v110
    %v113 = vsel %vm49, %v111, 0
    %115 = vmatpush.msra.mxu0 0.0
    %116 = vmatpush.msra.mxu0 0.0
    %117 = vmatpush.msra.mxu0 0.0
    %118 = vmatpush.msra.mxu0 0.0
    %119 = vmatpush.msra.mxu0 0.0
    %120 = vmatpush.msra.mxu0 0.0
    %121 = vmatpush.msra.mxu0 0.0
    %122 = vmatpush.msra.mxu0 0.0
    %123 = vmatpush.msra.mxu0 0.0
    %124 = vmatpush.msra.mxu0 %v55
    %125 = vmatpush.msra.mxu0 %v38
    %126 = vmatpush.msra.mxu0 %v37
    %127 = vmatpush.msra.mxu0 %v36
    %128 = vmatpush.msra.mxu0 %v35
    %129 = vmatpush.msra.mxu0 %v34
    %130 = vmatpush.msra.mxu0 %v33
    %131 = vmatmul.f32.gmra.mxu0 %v113
    %v132 = vpop.f32.mrf.mxu0
    %v133 = vadd.f32 0.0, %v132
    %134 = vdwg.mxu0
    %v135 = vld [vmem:[%s2] sm:$0xff]
    %v136 = vld [vmem:[%s2 + $0x8] sm:$0xff]
    %vm137 = vcmask 64512
    %v139 = vsel %vm137, %v104, 0
    %141 = vmatpush.msra.mxu0 0.0
    %142 = vmatpush.msra.mxu0 0.0
    %143 = vmatpush.msra.mxu0 0.0
    %144 = vmatpush.msra.mxu0 0.0
    %145 = vmatpush.msra.mxu0 0.0
    %146 = vmatpush.msra.mxu0 0.0
    %147 = vmatpush.msra.mxu0 0.0
    %148 = vmatpush.msra.mxu0 0.0
    %149 = vmatpush.msra.mxu0 0.0
    %150 = vmatpush.msra.mxu0 0.0
    %151 = vmatpush.msra.mxu0 0.0
    %152 = vmatpush.msra.mxu0 0.0
    %153 = vmatpush.msra.mxu0 0.0
    %154 = vmatpush.msra.mxu0 0.0
    %155 = vmatpush.msra.mxu0 0.0
    %156 = vmatpush.msra.mxu0 %v136
    %157 = vmatmul.f32.gmra.mxu0 %v139
    %v158 = vpop.f32.mrf.mxu0
    %v159 = vadd.f32 0.0, %v158
    %160 = vdwg.mxu0
    %v162 = vsel %vm137, %v75, 0
    %164 = vmatpush.msra.mxu0 0.0
    %165 = vmatpush.msra.mxu0 0.0
    %166 = vmatpush.msra.mxu0 0.0
    %167 = vmatpush.msra.mxu0 0.0
    %168 = vmatpush.msra.mxu0 0.0
    %169 = vmatpush.msra.mxu0 0.0
    %170 = vmatpush.msra.mxu0 0.0
    %171 = vmatpush.msra.mxu0 0.0
    %172 = vmatpush.msra.mxu0 0.0
    %173 = vmatpush.msra.mxu0 0.0
    %174 = vmatpush.msra.mxu0 0.0
    %175 = vmatpush.msra.mxu0 0.0
    %176 = vmatpush.msra.mxu0 0.0
    %177 = vmatpush.msra.mxu0 0.0
    %178 = vmatpush.msra.mxu0 0.0
    %179 = vmatpush.msra.mxu0 %v135
    %180 = vmatmul.f32.gmra.mxu0 %v162
    %v181 = vpop.f32.mrf.mxu0
    %v182 = vadd.f32 %v159, %v181
    %183 = vdwg.mxu0
    %v184 = vld [vmem:[%s2 + $0x10] sm:$0xff]
    %v186 = vsel %vm137, %v133, 0
    %188 = vmatpush.msra.mxu0 0.0
    %189 = vmatpush.msra.mxu0 0.0
    %190 = vmatpush.msra.mxu0 0.0
    %191 = vmatpush.msra.mxu0 0.0
    %192 = vmatpush.msra.mxu0 0.0
    %193 = vmatpush.msra.mxu0 0.0
    %194 = vmatpush.msra.mxu0 0.0
    %195 = vmatpush.msra.mxu0 0.0
    %196 = vmatpush.msra.mxu0 0.0
    %197 = vmatpush.msra.mxu0 0.0
    %198 = vmatpush.msra.mxu0 0.0
    %199 = vmatpush.msra.mxu0 0.0
    %200 = vmatpush.msra.mxu0 0.0
    %201 = vmatpush.msra.mxu0 0.0
    %202 = vmatpush.msra.mxu0 0.0
    %203 = vmatpush.msra.mxu0 %v184
    %204 = vmatmul.f32.gmra.mxu0 %v186
    %v205 = vpop.f32.mrf.mxu0
    %v206 = vadd.f32 0.0, %v205
    %207 = vdwg.mxu0
    %v208 = vadd.f32 %v182, %v206
    %v209 = vld [vmem:[%s3] sm:$0x1]
    %v211 = vperm.slane %v209, 0
    %v213 = vadd.f32 %v208, %v211
    %v214 = vmax.f32 %v213, 0.0
    %v215 = vld [vmem:[%s4] sm:$0x1]
    %v217 = vperm.slane %v215, 0
    %v219 = vmul.f32 %v214, %v217
    %vm220 = vcmask 261120
    %v221 = vsel %vm220, %v219, 0.0
    %222 = vadd.xlane.f32.xlu0 %v221
    %v223 = vpop.xlane.xlu0 %222
    %v224 = vtanh.pop %v223
    %225 = vxpose.xlu0.b32.start [1/16] %v224, 128
    %226 = vxpose.xlu0.b32.cont [2/16] 0.0, 128
    %227 = vxpose.xlu0.b32.cont [3/16] 0.0, 128
    %228 = vxpose.xlu0.b32.cont [4/16] 0.0, 128
    %229 = vxpose.xlu0.b32.cont [5/16] 0.0, 128
    %230 = vxpose.xlu0.b32.cont [6/16] 0.0, 128
    %231 = vxpose.xlu0.b32.cont [7/16] 0.0, 128
    %232 = vxpose.xlu0.b32.cont [8/16] 0.0, 128
    %233 = vxpose.xlu0.b32.cont [9/16] 0.0, 128
    %234 = vxpose.xlu0.b32.cont [10/16] 0.0, 128
    %235 = vxpose.xlu0.b32.cont [11/16] 0.0, 128
    %236 = vxpose.xlu0.b32.cont [12/16] 0.0, 128
    %237 = vxpose.xlu0.b32.cont [13/16] 0.0, 128
    %238 = vxpose.xlu0.b32.cont [14/16] 0.0, 128
    %239 = vxpose.xlu0.b32.cont [15/16] 0.0, 128
    %240 = vxpose.xlu0.b32.end [16/16] 0.0, 128
    %v241 = vpop.trf.xlu0
    %v242 = vpop.trf.xlu0
    %v243 = vpop.trf.xlu0
    %v244 = vpop.trf.xlu0
    %v245 = vpop.trf.xlu0
    %v246 = vpop.trf.xlu0
    %v247 = vpop.trf.xlu0
    %v248 = vpop.trf.xlu0
    %v249 = vpop.trf.xlu0
    %v250 = vpop.trf.xlu0
    %v251 = vpop.trf.xlu0
    %v252 = vpop.trf.xlu0
    %v253 = vpop.trf.xlu0
    %v254 = vpop.trf.xlu0
    %v255 = vpop.trf.xlu0
    %v256 = vpop.trf.xlu0
    %v258 = vsel %vm137, %v241, 0
    %260 = vmatpush.msra.mxu0 0.0
    %261 = vmatpush.msra.mxu0 0.0
    %262 = vmatpush.msra.mxu0 0.0
    %263 = vmatpush.msra.mxu0 0.0
    %264 = vmatpush.msra.mxu0 0.0
    %265 = vmatpush.msra.mxu0 0.0
    %266 = vmatpush.msra.mxu0 0.0
    %267 = vmatpush.msra.mxu0 0.0
    %268 = vmatpush.msra.mxu0 0.0
    %269 = vmatpush.msra.mxu0 0.0
    %270 = vmatpush.msra.mxu0 0.0
    %271 = vmatpush.msra.mxu0 0.0
    %272 = vmatpush.msra.mxu0 0.0
    %273 = vmatpush.msra.mxu0 0.0
    %274 = vmatpush.msra.mxu0 0.0
    %275 = vmatpush.msra.mxu0 %v214
    %276 = vmatmul.f32.gmra.mxu0 %v258
    %v277 = vpop.f32.mrf.mxu0
    %v278 = vadd.f32 0.0, %v277
    %279 = vdwg.mxu0
    %v280 = vld [vmem:[%s5] sm:$0xff]
    %v281 = vld [vmem:[%s5 + $0x8] sm:$0xff]
    %v282 = vld [vmem:[%s5 + $0x10] sm:$0xff]
    %v283 = vld [vmem:[%s5 + $0x18] sm:$0xff]
    %v284 = vld [vmem:[%s6] sm:$0x1]
    %v286 = vsel %vm220, %v278, 0
    %288 = vmatpush.msra.mxu0 0.0
    %289 = vmatpush.msra.mxu0 0.0
    %290 = vmatpush.msra.mxu0 0.0
    %291 = vmatpush.msra.mxu0 0.0
    %292 = vmatpush.msra.mxu0 0.0
    %293 = vmatpush.msra.mxu0 0.0
    %294 = vmatpush.msra.mxu0 0.0
    %295 = vmatpush.msra.mxu0 0.0
    %296 = vmatpush.msra.mxu0 0.0
    %297 = vmatpush.msra.mxu0 0.0
    %298 = vmatpush.msra.mxu0 0.0
    %299 = vmatpush.msra.mxu0 0.0
    %300 = vmatpush.msra.mxu0 %v283
    %301 = vmatpush.msra.mxu0 %v282
    %302 = vmatpush.msra.mxu0 %v281
    %303 = vmatpush.msra.mxu0 %v280
    %304 = vmatmul.f32.gmra.mxu0 %v286
    %v305 = vpop.f32.mrf.mxu0
    %v306 = vadd.f32 %v284, %v305
    %307 = vdwg.mxu0
    %v308 = vmax.f32 %v306, 0.0
    %v309 = vld [vmem:[%s7] sm:$0xff]
    %v310 = vld [vmem:[%s7 + $0x8] sm:$0xff]
    %v311 = vld [vmem:[%s8] sm:$0x1]
    %vm312 = vcmask 130048
    %v314 = vsel %vm312, %v308, 0
    %316 = vmatpush.msra.mxu0 0.0
    %317 = vmatpush.msra.mxu0 0.0
    %318 = vmatpush.msra.mxu0 0.0
    %319 = vmatpush.msra.mxu0 0.0
    %320 = vmatpush.msra.mxu0 0.0
    %321 = vmatpush.msra.mxu0 0.0
    %322 = vmatpush.msra.mxu0 0.0
    %323 = vmatpush.msra.mxu0 0.0
    %324 = vmatpush.msra.mxu0 0.0
    %325 = vmatpush.msra.mxu0 0.0
    %326 = vmatpush.msra.mxu0 0.0
    %327 = vmatpush.msra.mxu0 0.0
    %328 = vmatpush.msra.mxu0 0.0
    %329 = vmatpush.msra.mxu0 0.0
    %330 = vmatpush.msra.mxu0 %v310
    %331 = vmatpush.msra.mxu0 %v309
    %332 = vmatmul.f32.gmra.mxu0 %v314
    %v333 = vpop.f32.mrf.mxu0
    %v334 = vadd.f32 %v311, %v333
    %335 = vdwg.mxu0
    %v336 = vtanh.pop %v334
    %vm337 = vcmask 57344
    %338 = vst.msk [vmem:[#allocation2] sm:$0x1] %vm337, %v336
    // Predicated region
    $region38: #{ast_model_forward.1} parent=1 // pred_check
      _
    $region39: #{ast_model_forward.1} parent=1 // pred_check_branch
      %340 = sbr.rel (0) target = $region41
    $region40: #{ast_model_forward.1} parent=1 // pred_region
      %342 = vsyncadd [#allocation3], 0
      %s344 = sshll.u32 [#allocation2], 4
      %s345 = int_to_ptr.vmem [resolvable:$true] %s344
      %s346 = sshll.u32 %s9, 4
      %s347 = int_to_ptr.hbm [resolvable:$true] %s346
      %349 = dma.vmem_to_hbm [thread:$0]  %s345, 16, %s347, [#allocation3]
    $region41: #{ast_model_forward.1} parent=1 // pred_fallthru
      _
    // Predicated region
    $region42: #{ast_model_forward.1} parent=1 // pred_check
      _
    $region43: #{ast_model_forward.1} parent=1 // pred_check_branch
      %351 = sbr.rel (0) target = $region45
    $region44: #{ast_model_forward.1} parent=1 // pred_region
      %353 = dma.done [#allocation3], 16
    $region45: #{ast_model_forward.1} parent=1 // pred_fallthru
      _
    %354 = vsyncpa [#allocation3], 1

</llo_original>
